<compile_context>
chip_gen: v7x
topology: tpu7x:2x2x1
jax: 0.10.0
libtpu: 0.0.40
codegen_flags: <defaults>
</compile_context>

<pallas_src>
import jax
import jax.numpy as jnp
from jax.experimental import pallas as pl
from jax.experimental.pallas import tpu as pltpu


_LANES = 512                 # lane-dense last dim (multiple of 128)
_DEFAULT_BLOCK_ROWS = 1024   # 1024 x 512 x 4B = 2 MiB per tile; with double-
                             # buffered in + aliased out this stays well under
                             # the 32 MiB scoped VMEM default on all generations
_PALLAS_MIN_ELEMS = 1 << 16  # below this, pallas launch overhead dominates


def _add_one_kernel(x_ref, o_ref):
    # Elementwise hot path of jlNet.forward: input += 1 (dtype-preserving).
    o_ref[...] = x_ref[...] + jnp.asarray(1, dtype=x_ref.dtype)


def _add_one_pallas(x: jax.Array, block_rows: int = _DEFAULT_BLOCK_ROWS) -> jax.Array:
    orig_shape = x.shape
    n = x.size
    flat = x.reshape(-1)

    rows_needed = max(int(pl.cdiv(n, _LANES)), 1)
    if rows_needed <= block_rows:
        # Single block covering the full (padded) array: block dims == array
        # dims, so the (8, 128) divisibility rule does not apply.
        tm = rows_needed
    else:
        # Multi-block: second-to-last block dim must be a multiple of 8.
        tm = max(8, (block_rows // 8) * 8)

    rows = int(pl.cdiv(rows_needed, tm)) * tm   # pad so the grid divides evenly
    padded = rows * _LANES
    if padded != n:
        flat = jnp.pad(flat, (0, padded - n))
    x2d = flat.reshape(rows, _LANES)

    out2d = pl.pallas_call(
        _add_one_kernel,
        out_shape=jax.ShapeDtypeStruct((rows, _LANES), x.dtype),
        grid=(rows // tm,),
        in_specs=[pl.BlockSpec((tm, _LANES), lambda i: (i, 0))],
        out_specs=pl.BlockSpec((tm, _LANES), lambda i: (i, 0)),
        # PyTorch op is in-place; aliasing lets XLA reuse the input buffer.
        input_output_aliases={0: 0},
        compiler_params=pltpu.CompilerParams(
            dimension_semantics=("parallel",)),
        cost_estimate=pl.CostEstimate(
            flops=padded,
            transcendentals=0,
            bytes_accessed=2 * padded * x.dtype.itemsize),
    )(x2d)

    return out2d.reshape(-1)[:n].reshape(orig_shape)


def jl_net_forward(x: jax.Array, *, force_pallas: bool = False,
                   block_rows: int = _DEFAULT_BLOCK_ROWS) -> jax.Array:
    """Pallas equivalent of jlNet.forward: returns input + 1 (same shape/dtype)."""
    if not force_pallas and x.size < _PALLAS_MIN_ELEMS:
        # Tiny tensors: custom-call launch overhead dominates; let XLA fuse it.
        return x + jnp.asarray(1, dtype=x.dtype)
    return _add_one_pallas(x, block_rows=block_rows)


if __name__ == "__main__":
    key = jax.random.PRNGKey(0)
    k1, k2 = jax.random.split(key)

    # Small NCHW input consistent with typical module usage.
    x = jax.random.normal(k1, (2, 4, 16, 16), dtype=jnp.float32)
    out = jl_net_forward(x, force_pallas=True)   # exercise the Pallas path
    out = jax.block_until_ready(out)
    assert out.shape == x.shape and out.dtype == x.dtype
    assert jnp.allclose(out, x + 1.0)

    # Second small case exercising the multi-block pipelined path (4 grid
    # steps) plus tail padding/trim for a non-divisible element count.
    x2 = jax.random.normal(k2, (2, 7, 30, 30), dtype=jnp.float32)
    out2 = jax.block_until_ready(jl_net_forward(x2, force_pallas=True, block_rows=8))
    assert out2.shape == x2.shape and out2.dtype == x2.dtype
    assert jnp.allclose(out2, x2 + 1.0)

    print("KERNEL_OK")
</pallas_src>

<mosaic_0001>
module attributes {stable_mosaic.version = 11 : i64} {
  func.func @_add_one_kernel(%arg0: i32, %arg1: memref<4x512xf32, #tpu.memory_space<vmem>>, %arg2: memref<4x512xf32, #tpu.memory_space<vmem>>) attributes {dimension_semantics = [#tpu.dimension_semantics<parallel>], iteration_bounds = array<i64: 1>, scalar_prefetch = 0 : i64, scratch_operands = 0 : i64, tpu.core_type = #tpu.core_type<tc>, window_params = [{transform_indices = @transform_0, window_bounds = array<i64: 4, 512>}, {transform_indices = @transform_1, window_bounds = array<i64: 4, 512>}]} {
    %c0 = arith.constant 0 : index
    %c0_0 = arith.constant 0 : index
    %0 = vector.load %arg1[%c0, %c0_0] : memref<4x512xf32, #tpu.memory_space<vmem>>, vector<4x512xf32>
    %cst = arith.constant 1.000000e+00 : f32
    %1 = vector.broadcast %cst : f32 to vector<4x512xf32>
    %2 = arith.addf %0, %1 : vector<4x512xf32>
    %c0_1 = arith.constant 0 : index
    %c0_2 = arith.constant 0 : index
    %3 = vector.load %arg2[%c0_1, %c0_2] : memref<4x512xf32, #tpu.memory_space<vmem>>, vector<4x512xf32>
    tpu.vector_store %arg2[%c0_1, %c0_2], %2 {strides = array<i32>} : memref<4x512xf32, #tpu.memory_space<vmem>>, vector<4x512xf32>,
    return
  }
  func.func @transform_0(%arg0: i32) -> (i32, i32) {
    %c0_i32 = arith.constant 0 : i32
    %c0_i32_0 = arith.constant 0 : i32
    return %arg0, %c0_i32 : i32, i32
  }
  func.func @transform_1(%arg0: i32) -> (i32, i32) {
    %c0_i32 = arith.constant 0 : i32
    %c0_i32_0 = arith.constant 0 : i32
    return %arg0, %c0_i32 : i32, i32
  }
}

</mosaic_0001>

<llo_original>
// kernel: tpu_custom_call.1
$region0: #{tpu_custom_call.1}
  #allocation0 [shape = 'u32[]', space=smem, size = 0x4, offset = 0x4, fixed_abs, tag = 'smem constant byte address 0x4 - core index']
  #allocation1 [shape = 'u32[144,128]{1,0:T(1,128)}', space=vmem, size = 0x12000, scoped, tag = 'internal scratch']
  %s0 = inlined_call_operand.hbm [shape: f32[4,512], index: 0, kind: input, shape index: {}, may-alias: {0,1}]
  %s1 = inlined_call_operand.hbm [shape: f32[4,512], index: 1, kind: output, shape index: {}, may-alias: {0,1}]
  %s2 = sld [smem:[#allocation0]]
  $region18: #{tpu_custom_call.1} parent=0
    _
  %s4 = ssub.s32 1, %s2
  %s5 = scalar_select 0, %s4, %s2
  $region1: #{tpu_custom_call.1} parent=0
    #allocation2 [shape = 'u8[8192]{0}', space=vmem, size = 0x2000, scoped, tag = 'input window, operand 0, single buffered']
    #allocation3 [shape = 's32[1]{0}', space=sflag, size = 0x4, scoped, tag = 'scoped memory for tpu_custom_call.1']
    #allocation4 [shape = 's32[1]{0}', space=sflag, size = 0x4, scoped, tag = 'scoped memory for tpu_custom_call.1']
    #allocation5 [shape = 'u8[8192]{0}', space=vmem, size = 0x2000, scoped, tag = 'output window, operand 0, single buffered']
    %6 = vsyncpa [#allocation3], 0
    %7 = vsyncpa [#allocation4], 0
    // Predicated region
    $region2: #{tpu_custom_call.1} parent=1 // pred_check
      _
    $region3: #{tpu_custom_call.1} parent=1 // pred_check_branch
      %9 = sbr.rel (0) target = $region5
    $region4: #{tpu_custom_call.1} parent=1 // pred_region
      %s11 = ssub.s32 256, 256
      %12 = vsyncadd [#allocation3], %s11
      %s14 = sshll.u32 [#allocation2], 4
      %s15 = int_to_ptr.vmem [resolvable:$true] %s14
      %17 = dma.hbm_to_vmem [thread:$0]  %s0, 256, %s15, [#allocation3]
    $region5: #{tpu_custom_call.1} parent=1 // pred_fallthru
      _
    // Predicated region
    $region6: #{tpu_custom_call.1} parent=1 // pred_check
      _
    $region7: #{tpu_custom_call.1} parent=1 // pred_check_branch
      %19 = sbr.rel (0) target = $region9
    $region8: #{tpu_custom_call.1} parent=1 // pred_region
      %20 = dma.done [#allocation3], 256
    $region9: #{tpu_custom_call.1} parent=1 // pred_fallthru
      _
    %v21 = vld [vmem:[#allocation2] sm:$0xff]
    %v22 = vld [vmem:[#allocation2 + $0x8] sm:$0xff]
    %v23 = vadd.f32 %v21, 1.0
    %v24 = vadd.f32 %v22, 1.0
    %25 = vst [vmem:[#allocation5] sm:$0xff] %v23
    %26 = vst [vmem:[#allocation5 + $0x8] sm:$0xff] %v24
    // Predicated region
    $region10: #{tpu_custom_call.1} parent=1 // pred_check
      _
    $region11: #{tpu_custom_call.1} parent=1 // pred_check_branch
      %28 = sbr.rel (0) target = $region13
    $region12: #{tpu_custom_call.1} parent=1 // pred_region
      %s30 = ssub.s32 256, 256
      %31 = vsyncadd [#allocation4], %s30
      %s33 = sshll.u32 [#allocation5], 4
      %s34 = int_to_ptr.vmem [resolvable:$true] %s33
      %36 = dma.vmem_to_hbm [thread:$0]  %s34, 256, %s1, [#allocation4]
    $region13: #{tpu_custom_call.1} parent=1 // pred_fallthru
      _
    // Predicated region
    $region14: #{tpu_custom_call.1} parent=1 // pred_check
      _
    $region15: #{tpu_custom_call.1} parent=1 // pred_check_branch
      %38 = sbr.rel (0) target = $region17
    $region16: #{tpu_custom_call.1} parent=1 // pred_region
      %39 = dma.done [#allocation4], 256
    $region17: #{tpu_custom_call.1} parent=1 // pred_fallthru
      _
    %40 = vsyncpa [#allocation3], 1
    %41 = vsyncpa [#allocation4], 1

</llo_original>
